<compile_context>
chip_gen: v5e
topology: v5e:2x2
jax: 0.10.0
libtpu: 0.0.40
codegen_flags: <defaults>
</compile_context>

<pallas_src>
import math

import jax
import jax.numpy as jnp
from jax.experimental import pallas as pl
from jax.experimental.pallas import tpu as pltpu

LANE = 128
SMALL_BYPASS_BYTES = 512 * 1024   # below this, the fused XLA add wins
MIN_GRID_STEPS = 4                # >= 2 pipelined steps per TensorCore (v7x megacore)


def _add2(a, b):
    # Upcast 16-bit floats so the 2-term sum rounds once (torch.sum-like accumulation).
    if a.dtype in (jnp.dtype(jnp.bfloat16), jnp.dtype(jnp.float16)):
        return a.astype(jnp.float32) + b.astype(jnp.float32)
    return a + b


def _sum2_stacked_kernel(x_ref, o_ref):
    # x_ref: (2, tr, 128) lane-dense block of the stacked input; o_ref: (tr, 128).
    o_ref[...] = _add2(x_ref[0], x_ref[1]).astype(o_ref.dtype)


def _sum2_pair_kernel(a_ref, b_ref, o_ref):
    # a_ref, b_ref, o_ref: (tr, 128) lane-dense blocks. Pure VPU add.
    o_ref[...] = _add2(a_ref[...], b_ref[...]).astype(o_ref.dtype)


def _target_block_bytes():
    """Per-generation block-size target (stays inside the scoped-VMEM default)."""
    try:
        kind = jax.devices()[0].device_kind.lower()
    except Exception:  # pragma: no cover - be conservative if query fails
        kind = ""
    if "v6" in kind or "v7" in kind:
        return 4 << 20   # 6 x 4 MiB double-buffered = 24 MiB < 32 MiB default
    return 2 << 20       # 6 x 2 MiB = 12 MiB < 16 MiB default (v5e and older)


def _row_tile(rows, itemsize):
    """Row tile: dtype-aware sublane multiple, big blocks, >= MIN_GRID_STEPS steps."""
    sublane = max(8, 32 // itemsize)          # 8 (f32), 16 (bf16/f16), 32 (int8/fp8)
    block_bytes = _target_block_bytes()
    tr = max(sublane, (block_bytes // (LANE * itemsize)) // sublane * sublane)
    if rows < MIN_GRID_STEPS * tr:
        tr = max(sublane, pl.cdiv(pl.cdiv(rows, MIN_GRID_STEPS), sublane) * sublane)
    return tr


def sum_stacked2(x, *, min_pallas_bytes=SMALL_BYPASS_BYTES):
    """JAX/Pallas equivalent of sum_stacked2.forward: x[0] + x[1]."""
    assert x.shape[0] == 2, "leading (stack) dimension must be 2"
    out_shape = x.shape[1:]
    dtype = x.dtype
    total = math.prod(out_shape)
    itemsize = jnp.dtype(dtype).itemsize
    rows = total // LANE
    tail = total - rows * LANE

    # Tiny inputs: fused XLA add is already HBM-roofline-bound; skip the custom call.
    if rows == 0 or total * itemsize <= min_pallas_bytes:
        return (x[0] + x[1]).reshape(out_shape)

    tr = _row_tile(rows, itemsize)
    grid = (pl.cdiv(rows, tr),)

    if tail == 0:
        # Fully 128-aligned: single zero-copy stacked operand, ragged final block
        # masked by Pallas -> no padding copies, no output slice.
        xr = x.reshape(2, rows, LANE)
        out = pl.pallas_call(
            _sum2_stacked_kernel,
            out_shape=jax.ShapeDtypeStruct((rows, LANE), dtype),
            grid=grid,
            in_specs=[pl.BlockSpec((2, tr, LANE), lambda i: (0, i, 0))],
            out_specs=pl.BlockSpec((tr, LANE), lambda i: (i, 0)),
            compiler_params=pltpu.CompilerParams(
                dimension_semantics=("parallel",)),
        )(xr)
        return out.reshape(out_shape)

    # Unaligned: Pallas over the 128-aligned main region (no whole-array padding);
    # the < 128-element tail is a tiny fused jnp add stitched on at the end.
    main = rows * LANE
    x2 = x.reshape(2, total)
    a_main = x2[0, :main].reshape(rows, LANE)
    b_main = x2[1, :main].reshape(rows, LANE)
    out_main = pl.pallas_call(
        _sum2_pair_kernel,
        out_shape=jax.ShapeDtypeStruct((rows, LANE), dtype),
        grid=grid,
        in_specs=[
            pl.BlockSpec((tr, LANE), lambda i: (i, 0)),
            pl.BlockSpec((tr, LANE), lambda i: (i, 0)),
        ],
        out_specs=pl.BlockSpec((tr, LANE), lambda i: (i, 0)),
        compiler_params=pltpu.CompilerParams(
            dimension_semantics=("parallel",),
            allow_input_fusion=[True, True]),
    )(a_main, b_main)
    tail_sum = _add2(x2[0, main:], x2[1, main:]).astype(dtype)
    out_flat = jnp.concatenate([out_main.reshape(-1), tail_sum])
    return out_flat.reshape(out_shape)


if __name__ == "__main__":
    key = jax.random.PRNGKey(0)
    k1, k2, k3, k4 = jax.random.split(key, 4)

    # 1) Small stacked input (2, 4, 16, 16): default threshold -> fused jnp bypass.
    x_small = jax.random.normal(k1, (2, 4, 16, 16), dtype=jnp.float32)
    out_bypass = jax.block_until_ready(sum_stacked2(x_small))
    ref_small = jnp.sum(x_small, axis=0)
    assert out_bypass.shape == ref_small.shape == (4, 16, 16)
    assert jnp.allclose(out_bypass, ref_small, atol=1e-6, rtol=1e-6)

    # 2) Same small input, forced through the aligned Pallas path (total % 128 == 0).
    out_aligned = jax.block_until_ready(sum_stacked2(x_small, min_pallas_bytes=0))
    assert jnp.allclose(out_aligned, ref_small, atol=1e-6, rtol=1e-6)

    # 3) Medium aligned input -> multi-step parallel grid (rows=512, grid=4).
    x_med = jax.random.normal(k2, (2, 16, 32, 128), dtype=jnp.float32)
    out_med = jax.block_until_ready(sum_stacked2(x_med, min_pallas_bytes=0))
    ref_med = jnp.sum(x_med, axis=0)
    assert out_med.shape == ref_med.shape == (16, 32, 128)
    assert jnp.allclose(out_med, ref_med, atol=1e-6, rtol=1e-6)

    # 4) Unaligned flat size (4*9*30 = 1080 -> 8 full rows + 56-element tail).
    x_odd = jax.random.normal(k3, (2, 4, 9, 30), dtype=jnp.float32)
    out_odd = jax.block_until_ready(sum_stacked2(x_odd, min_pallas_bytes=0))
    ref_odd = jnp.sum(x_odd, axis=0)
    assert out_odd.shape == ref_odd.shape == (4, 9, 30)
    assert jnp.allclose(out_odd, ref_odd, atol=1e-6, rtol=1e-6)

    # 5) bf16 input through the Pallas path (f32 accumulation in-kernel).
    x_bf16 = jax.random.normal(k4, (2, 8, 16, 16), dtype=jnp.float32).astype(jnp.bfloat16)
    out_bf16 = jax.block_until_ready(sum_stacked2(x_bf16, min_pallas_bytes=0))
    ref_bf16 = jnp.sum(x_bf16.astype(jnp.float32), axis=0)
    assert out_bf16.shape == ref_bf16.shape == (8, 16, 16)
    assert jnp.allclose(out_bf16.astype(jnp.float32), ref_bf16, atol=1e-2, rtol=1e-2)

    print("KERNEL_OK")
</pallas_src>

<mosaic_0001>
module attributes {stable_mosaic.version = 11 : i64} {
  func.func @_sum2_stacked_kernel(%arg0: i32, %arg1: memref<2x8x128xf32, #tpu.memory_space<vmem>>, %arg2: memref<8x128xf32, #tpu.memory_space<vmem>>) attributes {dimension_semantics = [#tpu.dimension_semantics<parallel>], iteration_bounds = array<i64: 1>, scalar_prefetch = 0 : i64, scratch_operands = 0 : i64, tpu.core_type = #tpu.core_type<tc>, window_params = [{transform_indices = @transform_0, window_bounds = array<i64: 2, 8, 128>}, {transform_indices = @transform_1, window_bounds = array<i64: 8, 128>}]} {
    %c0 = arith.constant 0 : index
    %c0_0 = arith.constant 0 : index
    %c0_1 = arith.constant 0 : index
    %0 = vector.load %arg1[%c0, %c0_0, %c0_1] : memref<2x8x128xf32, #tpu.memory_space<vmem>>, vector<1x8x128xf32>
    %1 = vector.shape_cast %0 : vector<1x8x128xf32> to vector<8x128xf32>
    %c1 = arith.constant 1 : index
    %c0_2 = arith.constant 0 : index
    %c0_3 = arith.constant 0 : index
    %2 = vector.load %arg1[%c1, %c0_2, %c0_3] : memref<2x8x128xf32, #tpu.memory_space<vmem>>, vector<1x8x128xf32>
    %3 = vector.shape_cast %2 : vector<1x8x128xf32> to vector<8x128xf32>
    %4 = arith.addf %1, %3 : vector<8x128xf32>
    %c0_4 = arith.constant 0 : index
    %c0_5 = arith.constant 0 : index
    %5 = vector.load %arg2[%c0_4, %c0_5] : memref<8x128xf32, #tpu.memory_space<vmem>>, vector<8x128xf32>
    tpu.vector_store %arg2[%c0_4, %c0_5], %4 {strides = array<i32>} : memref<8x128xf32, #tpu.memory_space<vmem>>, vector<8x128xf32>,
    return
  }
  func.func @transform_0(%arg0: i32) -> (i32, i32, i32) {
    %c0_i32 = arith.constant 0 : i32
    %c0_i32_0 = arith.constant 0 : i32
    %c0_i32_1 = arith.constant 0 : i32
    return %c0_i32, %arg0, %c0_i32_0 : i32, i32, i32
  }
  func.func @transform_1(%arg0: i32) -> (i32, i32) {
    %c0_i32 = arith.constant 0 : i32
    %c0_i32_0 = arith.constant 0 : i32
    return %arg0, %c0_i32 : i32, i32
  }
}

</mosaic_0001>

<llo_original>
// kernel: tpu_custom_call.1
$region0: #{tpu_custom_call.1}
  #allocation0 [shape = 'u32[]', space=smem, size = 0x4, offset = 0x4, fixed_abs, tag = 'smem constant byte address 0x4 - core index']
  #allocation1 [shape = 'u32[72,128]{1,0:T(1,128)}', space=vmem, size = 0x9000, scoped, tag = 'internal scratch']
  %s0 = inlined_call_operand.hbm [shape: f32[2,8,128], index: 0, kind: input, shape index: {}]
  %s1 = inlined_call_operand.hbm [shape: f32[8,128], index: 1, kind: output, shape index: {}]
  %s2 = sld [smem:[#allocation0]]
  $region18: #{tpu_custom_call.1} parent=0
    _
  %s4 = ssub.s32 1, %s2
  %s5 = scalar_select 0, %s4, %s2
  $region1: #{tpu_custom_call.1} parent=0
    #allocation2 [shape = 'u8[8192]{0}', space=vmem, size = 0x2000, scoped, tag = 'input window, operand 0, single buffered']
    #allocation3 [shape = 's32[1]{0}', space=sflag, size = 0x4, scoped, tag = 'scoped memory for tpu_custom_call.1']
    #allocation4 [shape = 's32[1]{0}', space=sflag, size = 0x4, scoped, tag = 'scoped memory for tpu_custom_call.1']
    #allocation5 [shape = 'u8[4096]{0}', space=vmem, size = 0x1000, scoped, tag = 'output window, operand 0, single buffered']
    %6 = vsyncpa [#allocation3], 0
    %7 = vsyncpa [#allocation4], 0
    // Predicated region
    $region2: #{tpu_custom_call.1} parent=1 // pred_check
      _
    $region3: #{tpu_custom_call.1} parent=1 // pred_check_branch
      %9 = sbr.rel (0) target = $region5
    $region4: #{tpu_custom_call.1} parent=1 // pred_region
      %11 = vsyncadd [#allocation3], 0
      %s12 = sshll.u32 %s0, 4
      %s13 = int_to_ptr.hbm [resolvable:$true] %s12
      %s14 = sshll.u32 [#allocation2], 4
      %s15 = int_to_ptr.vmem [resolvable:$true] %s14
      %20 = dma.hbm_to_vmem [thread:$0]  %s13, 256, %s15, [#allocation3], 128, 128, 8
    $region5: #{tpu_custom_call.1} parent=1 // pred_fallthru
      _
    // Predicated region
    $region6: #{tpu_custom_call.1} parent=1 // pred_check
      _
    $region7: #{tpu_custom_call.1} parent=1 // pred_check_branch
      %22 = sbr.rel (0) target = $region9
    $region8: #{tpu_custom_call.1} parent=1 // pred_region
      %24 = dma.done [#allocation3], 256
    $region9: #{tpu_custom_call.1} parent=1 // pred_fallthru
      _
    %v25 = vld [vmem:[#allocation2] sm:$0xff]
    %s26 = scalar_lea.vmem [#allocation2], 8
    %v27 = vld [vmem:[%s26] sm:$0xff]
    %v28 = vadd.f32 %v25, %v27
    %29 = vst [vmem:[#allocation5] sm:$0xff] %v28
    // Predicated region
    $region10: #{tpu_custom_call.1} parent=1 // pred_check
      _
    $region11: #{tpu_custom_call.1} parent=1 // pred_check_branch
      %31 = sbr.rel (0) target = $region13
    $region12: #{tpu_custom_call.1} parent=1 // pred_region
      %33 = vsyncadd [#allocation4], 0
      %s35 = sshll.u32 [#allocation5], 4
      %s36 = int_to_ptr.vmem [resolvable:$true] %s35
      %s37 = sshll.u32 %s1, 4
      %s38 = int_to_ptr.hbm [resolvable:$true] %s37
      %40 = dma.vmem_to_hbm [thread:$0]  %s36, 128, %s38, [#allocation4]
    $region13: #{tpu_custom_call.1} parent=1 // pred_fallthru
      _
    // Predicated region
    $region14: #{tpu_custom_call.1} parent=1 // pred_check
      _
    $region15: #{tpu_custom_call.1} parent=1 // pred_check_branch
      %42 = sbr.rel (0) target = $region17
    $region16: #{tpu_custom_call.1} parent=1 // pred_region
      %44 = dma.done [#allocation4], 128
    $region17: #{tpu_custom_call.1} parent=1 // pred_fallthru
      _
    %45 = vsyncpa [#allocation3], 1
    %46 = vsyncpa [#allocation4], 1

</llo_original>
